<compile_context>
chip_gen: v7x
topology: tpu7x:2x2x1
jax: 0.10.0
libtpu: 0.0.40
codegen_flags: <defaults>
</compile_context>

<pallas_src>
import jax
import jax.numpy as jnp
from jax import lax
from jax.experimental import pallas as pl
from jax.experimental.pallas import tpu as pltpu


def _vq_kernel(z_ref, e_ref, e2h_ref, codes_ref, zq_ref, sse_ref):
    """One tile of (TN, D) rows of z_flat against the full (Kp, D) codebook."""
    z = z_ref[...].astype(jnp.float32)            # (TN, D)
    e = e_ref[...].astype(jnp.float32)            # (Kp, D)   (rows >= K are zero)
    e2h = e2h_ref[...]                            # (Kp, 1)   0.5*|e|^2, pad rows 1e30
    tn = z_ref.shape[0]
    kp = e_ref.shape[0]

    # Transposed selection score (Kp, TN): score[k, n] = <e_k, z_n> - 0.5*|e_k|^2.
    # argmax over k is identical to argmin of |z|^2 + |e|^2 - 2 z.e (the |z|^2
    # per-row constant and the -2 scale are dropped / folded in the wrapper).
    ze_t = lax.dot_general(e, z, (((1,), (1,)), ((), ())),
                           preferred_element_type=jnp.float32)      # (Kp, TN)
    score = ze_t - e2h                                              # (Kp, TN)

    # argmax over axis 0 (sublanes), first-occurrence tie-break -> matches
    # torch.argmin on the full distance.
    best = jnp.max(score, axis=0, keepdims=True)                    # (1, TN)
    iota_k = lax.broadcasted_iota(jnp.int32, (kp, tn), 0)           # (Kp, TN)
    codes = jnp.min(jnp.where(score == best, iota_k, kp), axis=0)   # (TN,)
    codes = codes.astype(jnp.int32)

    # Codebook gather via transposed one-hot matmul (MXU): z_q = onehot_T^T @ e.
    onehot_t = (codes[None, :] == iota_k).astype(jnp.float32)       # (Kp, TN)
    zq = lax.dot_general(onehot_t, e, (((0,), (0,)), ((), ())),
                         preferred_element_type=jnp.float32)        # (TN, D)

    # codes are already lane-dense along TN.
    codes_ref[...] = codes[None, None, :]                           # (1, 1, TN)
    zq_ref[...] = zq.astype(zq_ref.dtype)                           # (TN, D)

    # Per-tile squared-error partial: reduce only over rows (sublane reduce);
    # the final sum over the D lanes happens in the wrapper.
    diff = zq - z
    sse_ref[...] = jnp.sum(diff * diff, axis=0)[None, None, :]      # (1, 1, D)


def _pick_tile_n(n, want):
    """Largest row tile t with: t | n, t % 8 == 0 (sublane alignment), t <= want,
    and -- when possible -- n // t >= 2 so the 'parallel' grid axis can shard
    across both TensorCores on v7x."""
    cap = min(want, n)
    if n % 2 == 0 and n >= 16:
        cap = min(cap, n // 2)            # prefer G >= 2 (megacore)
    t = (cap // 8) * 8
    while t >= 8:
        if n % t == 0:
            return t
        t -= 8
    return n                              # fallback: single full tile


def vector_quantizer_forward(z, embedding, commitment_cost=0.25, tile_n=4096):
    """Eval-mode VectorQuantizer.forward.

    Args:
      z:          (B, H, W, D) float32, channels-last latent.
      embedding:  (K, D) float32 codebook.
    Returns:
      (vq_loss scalar f32, z_q (B,H,W,D), codes (B, H*W) int32)
    """
    B, H, W, D = z.shape
    K, D_e = embedding.shape
    assert D_e == D, "embedding_dim mismatch"
    N = B * H * W

    tile_n = _pick_tile_n(N, tile_n)
    G = N // tile_n

    # Pad codebook rows to a multiple of 128.  Padded rows are zero and get
    # 0.5*|e|^2 = 1e30 (kept in f32), so their score is -1e30 and they can
    # never win the argmax; zero rows contribute nothing through the one-hot.
    Kp = ((K + 127) // 128) * 128
    e = embedding.astype(jnp.float32)
    if Kp != K:
        e = jnp.concatenate([e, jnp.zeros((Kp - K, D), jnp.float32)], axis=0)
    e2h = 0.5 * jnp.sum(e * e, axis=1, keepdims=True)               # (Kp, 1)
    if Kp != K:
        pad_mask = (jnp.arange(Kp) >= K)[:, None]
        e2h = jnp.where(pad_mask, jnp.float32(1e30), e2h)

    z_flat = z.reshape(N, D)

    codes3d, zq_flat, sse_part = pl.pallas_call(
        _vq_kernel,
        out_shape=(
            jax.ShapeDtypeStruct((G, 1, tile_n), jnp.int32),   # codes, lane-dense
            jax.ShapeDtypeStruct((N, D), jnp.float32),         # z_q
            jax.ShapeDtypeStruct((G, 1, D), jnp.float32),      # per-tile SSE lane partial
        ),
        grid_spec=pltpu.PrefetchScalarGridSpec(
            num_scalar_prefetch=0,
            grid=(G,),
            in_specs=[
                pl.BlockSpec((tile_n, D), lambda i: (i, 0)),   # z_flat row tile
                pl.BlockSpec((Kp, D), lambda i: (0, 0)),       # resident codebook
                pl.BlockSpec((Kp, 1), lambda i: (0, 0)),       # resident 0.5*|e|^2
            ],
            out_specs=[
                pl.BlockSpec((1, 1, tile_n), lambda i: (i, 0, 0)),
                pl.BlockSpec((tile_n, D), lambda i: (i, 0)),
                pl.BlockSpec((1, 1, D), lambda i: (i, 0, 0)),
            ],
        ),
        compiler_params=pltpu.CompilerParams(
            dimension_semantics=("parallel",),   # no cross-step carry -> megacore-able
            vmem_limit_bytes=48 * 1024 * 1024,   # headroom for 4096-row tiles, < v7x 64 MiB
        ),
    )(z_flat, e, e2h)

    sse = jnp.sum(sse_part)
    mse = sse / jnp.float32(N * D)
    vq_loss = jnp.float32(commitment_cost) * mse

    z_q = zq_flat.reshape(z.shape).astype(z.dtype)
    z_q = z + lax.stop_gradient(z_q - z)            # straight-through estimator
    codes = codes3d.reshape(B, H * W)
    return vq_loss, z_q, codes


def _reference_forward(z, embedding, commitment_cost=0.25):
    """Pure-JAX reference mirroring the PyTorch module (eval mode)."""
    B = z.shape[0]
    D = z.shape[-1]
    z_flat = z.reshape(-1, D)
    dist = (jnp.sum(z_flat**2, 1, keepdims=True)
            + jnp.sum(embedding**2, 1)
            - 2.0 * z_flat @ embedding.T)
    codes = jnp.argmin(dist, axis=1).astype(jnp.int32)
    z_q = embedding[codes].reshape(z.shape)
    vq_loss = commitment_cost * jnp.mean((z_q - z) ** 2)
    z_q = z + lax.stop_gradient(z_q - z)
    return vq_loss, z_q, codes.reshape(B, -1)


if __name__ == "__main__":
    # Module hyper-params (synthetic): num_embeddings=64, embedding_dim=32.
    num_embeddings = 64
    embedding_dim = 32
    commitment_cost = 0.25

    key = jax.random.PRNGKey(0)
    k_emb, k_z = jax.random.split(key)

    # Deterministic xavier-uniform init of the codebook, like nn.init.xavier_uniform_.
    bound = (6.0 / (num_embeddings + embedding_dim)) ** 0.5
    embedding = jax.random.uniform(
        k_emb, (num_embeddings, embedding_dim), jnp.float32, -bound, bound)

    # Small latent: (B, H, W, D) = (2, 8, 8, 32)  -> N = 128 rows (G = 2 tiles).
    z = jax.random.normal(k_z, (2, 8, 8, embedding_dim), jnp.float32)

    vq_loss, z_q, codes = vector_quantizer_forward(
        z, embedding, commitment_cost=commitment_cost)
    jax.block_until_ready((vq_loss, z_q, codes))

    # Cross-check against the pure-JAX reference.
    ref_loss, ref_zq, ref_codes = _reference_forward(
        z, embedding, commitment_cost=commitment_cost)
    assert jnp.allclose(vq_loss, ref_loss, rtol=1e-5, atol=1e-5)
    assert jnp.allclose(z_q, ref_zq, rtol=1e-5, atol=1e-5)
    assert jnp.array_equal(codes, ref_codes)

    print("KERNEL_OK")
</pallas_src>

<mosaic_0001>
module attributes {stable_mosaic.version = 11 : i64} {
  func.func @_vq_kernel(%arg0: i32, %arg1: memref<64x32xf32, #tpu.memory_space<vmem>>, %arg2: memref<128x32xf32, #tpu.memory_space<vmem>>, %arg3: memref<128x1xf32, #tpu.memory_space<vmem>>, %arg4: memref<1x1x64xi32, #tpu.memory_space<vmem>>, %arg5: memref<64x32xf32, #tpu.memory_space<vmem>>, %arg6: memref<1x1x32xf32, #tpu.memory_space<vmem>>) attributes {dimension_semantics = [#tpu.dimension_semantics<parallel>], iteration_bounds = array<i64: 2>, scalar_prefetch = 0 : i64, scratch_operands = 0 : i64, tpu.core_type = #tpu.core_type<tc>, window_params = [{transform_indices = @transform_0, window_bounds = array<i64: 64, 32>}, {pipeline_mode = #tpu.pipeline_mode<synchronous>, transform_indices = @transform_1, window_bounds = array<i64: 128, 32>}, {pipeline_mode = #tpu.pipeline_mode<synchronous>, transform_indices = @transform_2, window_bounds = array<i64: 128, 1>}, {transform_indices = @transform_3, window_bounds = array<i64: 1, 1, 64>}, {transform_indices = @transform_4, window_bounds = array<i64: 64, 32>}, {transform_indices = @transform_5, window_bounds = array<i64: 1, 1, 32>}]} {
    %c0 = arith.constant 0 : index
    %c0_0 = arith.constant 0 : index
    %0 = vector.load %arg1[%c0, %c0_0] : memref<64x32xf32, #tpu.memory_space<vmem>>, vector<64x32xf32>
    %c0_1 = arith.constant 0 : index
    %c0_2 = arith.constant 0 : index
    %1 = vector.load %arg2[%c0_1, %c0_2] : memref<128x32xf32, #tpu.memory_space<vmem>>, vector<128x32xf32>
    %c0_3 = arith.constant 0 : index
    %c0_4 = arith.constant 0 : index
    %2 = vector.load %arg3[%c0_3, %c0_4] : memref<128x1xf32, #tpu.memory_space<vmem>>, vector<128x1xf32>
    %cst = arith.constant dense<0.000000e+00> : vector<128x64xf32>
    %3 = tpu.matmul %1, %0, %cst {dimension_numbers = #tpu.dot_dimension_numbers<[1], [1], [0], [0], [0, 0, 1, 0], [], []>} : vector<128x32xf32>, vector<64x32xf32>, vector<128x64xf32> -> vector<128x64xf32>
    %4 = vector.broadcast %2 : vector<128x1xf32> to vector<128x64xf32>
    %5 = arith.subf %3, %4 : vector<128x64xf32>
    %cst_5 = arith.constant dense<0xFF800000> : vector<64xf32>
    %6 = vector.multi_reduction <maximumf>, %5, %cst_5 [0] : vector<128x64xf32> to vector<64xf32>
    %7 = vector.shape_cast %6 : vector<64xf32> to vector<1x64xf32>
    %8 = tpu.iota {dimensions = array<i32: 0>} : vector<128x64xi32>
    %9 = vector.broadcast %7 : vector<1x64xf32> to vector<128x64xf32>
    %10 = arith.cmpf oeq, %5, %9 : vector<128x64xf32>
    %c128_i32 = arith.constant 128 : i32
    %11 = vector.broadcast %c128_i32 : i32 to vector<128x64xi32>
    %12 = arith.select %10, %8, %11 : vector<128x64xi1>, vector<128x64xi32>
    %cst_6 = arith.constant dense<2147483647> : vector<64xi32>
    %13 = vector.multi_reduction <minsi>, %12, %cst_6 [0] : vector<128x64xi32> to vector<64xi32>
    %14 = vector.shape_cast %13 : vector<64xi32> to vector<1x64xi32>
    %15 = vector.broadcast %14 : vector<1x64xi32> to vector<128x64xi32>
    %16 = arith.cmpi eq, %15, %8 : vector<128x64xi32>
    %17 = arith.extui %16 : vector<128x64xi1> to vector<128x64xi32>
    %18 = arith.sitofp %17 : vector<128x64xi32> to vector<128x64xf32>
    %cst_7 = arith.constant dense<0.000000e+00> : vector<64x32xf32>
    %19 = tpu.matmul %18, %1, %cst_7 {dimension_numbers = #tpu.dot_dimension_numbers<[0], [0], [1], [1], [0, 1, 1, 1], [], []>} : vector<128x64xf32>, vector<128x32xf32>, vector<64x32xf32> -> vector<64x32xf32>
    %20 = vector.shape_cast %13 : vector<64xi32> to vector<1x1x64xi32>
    %c0_8 = arith.constant 0 : index
    %c0_9 = arith.constant 0 : index
    %c0_10 = arith.constant 0 : index
    %21 = vector.load %arg4[%c0_8, %c0_9, %c0_10] : memref<1x1x64xi32, #tpu.memory_space<vmem>>, vector<1x1x64xi32>
    tpu.vector_store %arg4[%c0_8, %c0_9, %c0_10], %20 {strides = array<i32>} : memref<1x1x64xi32, #tpu.memory_space<vmem>>, vector<1x1x64xi32>,
    %c0_11 = arith.constant 0 : index
    %c0_12 = arith.constant 0 : index
    %22 = vector.load %arg5[%c0_11, %c0_12] : memref<64x32xf32, #tpu.memory_space<vmem>>, vector<64x32xf32>
    tpu.vector_store %arg5[%c0_11, %c0_12], %19 {strides = array<i32>} : memref<64x32xf32, #tpu.memory_space<vmem>>, vector<64x32xf32>,
    %23 = arith.subf %19, %0 : vector<64x32xf32>
    %24 = arith.mulf %23, %23 : vector<64x32xf32>
    %cst_13 = arith.constant dense<0.000000e+00> : vector<32xf32>
    %25 = vector.multi_reduction <add>, %24, %cst_13 [0] : vector<64x32xf32> to vector<32xf32>
    %26 = vector.shape_cast %25 : vector<32xf32> to vector<1x1x32xf32>
    %c0_14 = arith.constant 0 : index
    %c0_15 = arith.constant 0 : index
    %c0_16 = arith.constant 0 : index
    %27 = vector.load %arg6[%c0_14, %c0_15, %c0_16] : memref<1x1x32xf32, #tpu.memory_space<vmem>>, vector<1x1x32xf32>
    tpu.vector_store %arg6[%c0_14, %c0_15, %c0_16], %26 {strides = array<i32>} : memref<1x1x32xf32, #tpu.memory_space<vmem>>, vector<1x1x32xf32>,
    return
  }
  func.func @transform_0(%arg0: i32) -> (i32, i32) {
    %c0_i32 = arith.constant 0 : i32
    %c0_i32_0 = arith.constant 0 : i32
    return %arg0, %c0_i32 : i32, i32
  }
  func.func @transform_1(%arg0: i32) -> (i32, i32) {
    %c0_i32 = arith.constant 0 : i32
    %c0_i32_0 = arith.constant 0 : i32
    %c0_i32_1 = arith.constant 0 : i32
    return %c0_i32, %c0_i32_0 : i32, i32
  }
  func.func @transform_2(%arg0: i32) -> (i32, i32) {
    %c0_i32 = arith.constant 0 : i32
    %c0_i32_0 = arith.constant 0 : i32
    %c0_i32_1 = arith.constant 0 : i32
    return %c0_i32, %c0_i32_0 : i32, i32
  }
  func.func @transform_3(%arg0: i32) -> (i32, i32, i32) {
    %c0_i32 = arith.constant 0 : i32
    %c0_i32_0 = arith.constant 0 : i32
    %c0_i32_1 = arith.constant 0 : i32
    return %arg0, %c0_i32, %c0_i32_0 : i32, i32, i32
  }
  func.func @transform_4(%arg0: i32) -> (i32, i32) {
    %c0_i32 = arith.constant 0 : i32
    %c0_i32_0 = arith.constant 0 : i32
    return %arg0, %c0_i32 : i32, i32
  }
  func.func @transform_5(%arg0: i32) -> (i32, i32, i32) {
    %c0_i32 = arith.constant 0 : i32
    %c0_i32_0 = arith.constant 0 : i32
    %c0_i32_1 = arith.constant 0 : i32
    return %arg0, %c0_i32, %c0_i32_0 : i32, i32, i32
  }
}

</mosaic_0001>

<llo_original>
// kernel: tpu_custom_call.1
$region0: #{tpu_custom_call.1}
  #allocation0 [shape = 'u32[]', space=smem, size = 0x4, offset = 0x4, fixed_abs, tag = 'smem constant byte address 0x4 - core index']
  #allocation1 [shape = 'u32[144,128]{1,0:T(1,128)}', space=vmem, size = 0x12000, scoped, tag = 'internal scratch']
  %s0 = inlined_call_operand.vmem [shape: f32[128,32], index: 0, kind: input, shape index: {}]
  %s1 = inlined_call_operand.vmem [shape: f32[128,32], index: 1, kind: input, shape index: {}]
  %s2 = inlined_call_operand.vmem [shape: f32[128,1], index: 2, kind: input, shape index: {}]
  %s3 = inlined_call_operand.hbm [shape: s32[2,1,64], index: 3, kind: output, shape index: {0}]
  %s4 = inlined_call_operand.vmem [shape: f32[128,32], index: 4, kind: output, shape index: {1}]
  %s5 = inlined_call_operand.hbm [shape: f32[2,1,32], index: 5, kind: output, shape index: {2}]
  %6 = xla_tuple %s3, %s4, %s5
  %s7 = sld [smem:[#allocation0]]
  $region61: #{tpu_custom_call.1} parent=0
    _
  %s9 = ssub.s32 1, %s7
  %s10 = scalar_select 0, %s9, %s7
  $region1: #{tpu_custom_call.1} parent=0
    #allocation2 [shape = 'u8[1024]{0}', space=vmem, size = 0x400, scoped, tag = 'output window, operand 0']
    #allocation3 [shape = 's32[2]{0}', space=sflag, size = 0x8, scoped, tag = 'scoped memory for tpu_custom_call.1']
    #allocation4 [shape = 'u8[1024]{0}', space=vmem, size = 0x400, scoped, tag = 'output window, operand 2']
    #allocation5 [shape = 's32[2]{0}', space=sflag, size = 0x8, scoped, tag = 'scoped memory for tpu_custom_call.1']
    %11 = vsyncpa [#allocation3], 0
    %s12 = scalar_lea.sflag [#allocation3], 1
    %13 = vsyncpa %s12, 0
    %14 = vsyncpa [#allocation5], 0
    %s15 = scalar_lea.sflag [#allocation5], 1
    %16 = vsyncpa %s15, 0
    loop: start=0, step=1, limit=4
    $region2: #{tpu_custom_call.1} parent=1 // loop_pre_header
      _
    $region3: #{tpu_custom_call.1} parent=1 // loop_header
      %s18 = sphi 0, %s22
      %p19 = scmp.ge.s32.totalorder %s18, 4
      %s28 = sphi 0, %s30
      %s31 = sphi 0, %s28
      %s32 = sphi 0, %s31
      %s48 = sphi 0, %s32
      %s52 = sphi 0, %s52
      %s54 = sphi 0, %s52
      %s55 = sphi 0, %s54
      %s69 = sphi 0, %s55
      %s73 = sphi 0, %s73
      %s75 = sphi 0, %s73
      %s76 = sphi 0, %s75
      %s90 = sphi 0, %s76
      %s96 = sphi 0, %s98
      %s99 = sphi 0, %s96
      %s100 = sphi 0, %s99
      %s116 = sphi 0, %s100
      %s122 = sphi 0, %s124
      %s125 = sphi 0, %s122
      %s126 = sphi 0, %s125
      %s142 = sphi 0, %s126
      %s148 = sphi 0, %s150
      %s151 = sphi 0, %s148
      %s152 = sphi 0, %s151
      %s168 = sphi 0, %s152
    $region4: #{tpu_custom_call.1} parent=1 // loop_header_branch
      %21 = sbr.rel (%p19) target = $region8
    $region5: #{tpu_custom_call.1} parent=1 // loop_body
      %s23 = ssub.s32 %s18, 1
      %s24 = ssub.s32 %s18, 2
      %s25 = sadd.s32 %s18, 1
      %s26 = ssub.s32 %s18, %s25
      %p27 = scmp.eq.s32.totalorder %s26, 0
      %s29 = sadd.s32 %s28, 1
      %s30 = scalar_select %p27, %s28, %s29
      %p33 = pneg %p27
      %p34 = scmp.eq.s32.totalorder %s18, 1
      %p35 = por %p33, %p34
      %p36 = scmp.ne.s32.totalorder %s28, %s31
      %p37 = scmp.eq.s32.totalorder %s18, 0
      %p38 = por %p36, %p37
      %p39 = scmp.ne.s32.totalorder %s28, %s31
      %p40 = scmp.eq.s32.totalorder %s23, 1
      %p41 = por %p39, %p40
      %p42 = scmp.ne.s32.totalorder %s31, %s32
      %p43 = scmp.eq.s32.totalorder %s23, 0
      %p44 = por %p42, %p43
      %p45 = scmp.ne.s32.totalorder %s31, %s32
      %p46 = scmp.eq.s32.totalorder %s24, 1
      %p47 = por %p45, %p46
      %p49 = scmp.ne.s32.totalorder %s32, %s48
      %p50 = scmp.eq.s32.totalorder %s24, 0
      %p51 = por %p49, %p50
      %s53 = sadd.s32 %s52, 1
      %p56 = scmp.eq.s32.totalorder %s18, 1
      %p57 = scmp.ne.s32.totalorder %s52, %s54
      %p58 = scmp.eq.s32.totalorder %s18, 0
      %p59 = por %p57, %p58
      %p60 = scmp.ne.s32.totalorder %s52, %s54
      %p61 = scmp.eq.s32.totalorder %s23, 1
      %p62 = por %p60, %p61
      %p63 = scmp.ne.s32.totalorder %s54, %s55
      %p64 = scmp.eq.s32.totalorder %s23, 0
      %p65 = por %p63, %p64
      %p66 = scmp.ne.s32.totalorder %s54, %s55
      %p67 = scmp.eq.s32.totalorder %s24, 1
      %p68 = por %p66, %p67
      %p70 = scmp.ne.s32.totalorder %s55, %s69
      %p71 = scmp.eq.s32.totalorder %s24, 0
      %p72 = por %p70, %p71
      %s74 = sadd.s32 %s73, 1
      %p77 = scmp.eq.s32.totalorder %s18, 1
      %p78 = scmp.ne.s32.totalorder %s73, %s75
      %p79 = scmp.eq.s32.totalorder %s18, 0
      %p80 = por %p78, %p79
      %p81 = scmp.ne.s32.totalorder %s73, %s75
      %p82 = scmp.eq.s32.totalorder %s23, 1
      %p83 = por %p81, %p82
      %p84 = scmp.ne.s32.totalorder %s75, %s76
      %p85 = scmp.eq.s32.totalorder %s23, 0
      %p86 = por %p84, %p85
      %p87 = scmp.ne.s32.totalorder %s75, %s76
      %p88 = scmp.eq.s32.totalorder %s24, 1
      %p89 = por %p87, %p88
      %p91 = scmp.ne.s32.totalorder %s76, %s90
      %p92 = scmp.eq.s32.totalorder %s24, 0
      %p93 = por %p91, %p92
      %s94 = ssub.s32 %s18, %s25
      %p95 = scmp.eq.s32.totalorder %s94, 0
      %s97 = sadd.s32 %s96, 1
      %s98 = scalar_select %p95, %s96, %s97
      %p101 = pneg %p95
      %p102 = scmp.eq.s32.totalorder %s18, 1
      %p103 = por %p101, %p102
      %p104 = scmp.ne.s32.totalorder %s96, %s99
      %p105 = scmp.eq.s32.totalorder %s18, 0
      %p106 = por %p104, %p105
      %p107 = scmp.ne.s32.totalorder %s96, %s99
      %p108 = scmp.eq.s32.totalorder %s23, 1
      %p109 = por %p107, %p108
      %p110 = scmp.ne.s32.totalorder %s99, %s100
      %p111 = scmp.eq.s32.totalorder %s23, 0
      %p112 = por %p110, %p111
      %p113 = scmp.ne.s32.totalorder %s99, %s100
      %p114 = scmp.eq.s32.totalorder %s24, 1
      %p115 = por %p113, %p114
      %p117 = scmp.ne.s32.totalorder %s100, %s116
      %p118 = scmp.eq.s32.totalorder %s24, 0
      %p119 = por %p117, %p118
      %s120 = ssub.s32 %s18, %s25
      %p121 = scmp.eq.s32.totalorder %s120, 0
      %s123 = sadd.s32 %s122, 1
      %s124 = scalar_select %p121, %s122, %s123
      %p127 = pneg %p121
      %p128 = scmp.eq.s32.totalorder %s18, 1
      %p129 = por %p127, %p128
      %p130 = scmp.ne.s32.totalorder %s122, %s125
      %p131 = scmp.eq.s32.totalorder %s18, 0
      %p132 = por %p130, %p131
      %p133 = scmp.ne.s32.totalorder %s122, %s125
      %p134 = scmp.eq.s32.totalorder %s23, 1
      %p135 = por %p133, %p134
      %p136 = scmp.ne.s32.totalorder %s125, %s126
      %p137 = scmp.eq.s32.totalorder %s23, 0
      %p138 = por %p136, %p137
      %p139 = scmp.ne.s32.totalorder %s125, %s126
      %p140 = scmp.eq.s32.totalorder %s24, 1
      %p141 = por %p139, %p140
      %p143 = scmp.ne.s32.totalorder %s126, %s142
      %p144 = scmp.eq.s32.totalorder %s24, 0
      %p145 = por %p143, %p144
      %s146 = ssub.s32 %s18, %s25
      %p147 = scmp.eq.s32.totalorder %s146, 0
      %s149 = sadd.s32 %s148, 1
      %s150 = scalar_select %p147, %s148, %s149
      %p153 = pneg %p147
      %p154 = scmp.eq.s32.totalorder %s18, 1
      %p155 = por %p153, %p154
      %p156 = scmp.ne.s32.totalorder %s148, %s151
      %p157 = scmp.eq.s32.totalorder %s18, 0
      %p158 = por %p156, %p157
      %p159 = scmp.ne.s32.totalorder %s148, %s151
      %p160 = scmp.eq.s32.totalorder %s23, 1
      %p161 = por %p159, %p160
      %p162 = scmp.ne.s32.totalorder %s151, %s152
      %p163 = scmp.eq.s32.totalorder %s23, 0
      %p164 = por %p162, %p163
      %p165 = scmp.ne.s32.totalorder %s151, %s152
      %p166 = scmp.eq.s32.totalorder %s24, 1
      %p167 = por %p165, %p166
      %p169 = scmp.ne.s32.totalorder %s152, %s168
      %p170 = scmp.eq.s32.totalorder %s24, 0
      %p171 = por %p169, %p170
      %p172 = scmp.le.s32.totalorder 1, %s18
      %p173 = scmp.lt.s32.totalorder %s18, 3
      %p174 = pnand %p172, %p173
      %p175 = pneg %p174
      // Predicated region
      $region9: #{tpu_custom_call.1} parent=5 // pred_check
        _
      $region10: #{tpu_custom_call.1} parent=5 // pred_check_branch
        %177 = sbr.rel (%p174) target = $region12
      $region11: #{tpu_custom_call.1} parent=5 // pred_region
        %s178 = ssub.s32 %s18, 1
        // Predicated region
        $region13: #{tpu_custom_call.1} parent=11 // pred_check
          %p179 = pneg %p65
        $region14: #{tpu_custom_call.1} parent=11 // pred_check_branch
          %181 = sbr.rel (%p179) target = $region16
        $region15: #{tpu_custom_call.1} parent=11 // pred_region
          _
        $region16: #{tpu_custom_call.1} parent=11 // pred_fallthru
          _
        // Predicated region
        $region17: #{tpu_custom_call.1} parent=11 // pred_check
          %p182 = pneg %p86
        $region18: #{tpu_custom_call.1} parent=11 // pred_check_branch
          %184 = sbr.rel (%p182) target = $region20
        $region19: #{tpu_custom_call.1} parent=11 // pred_region
          _
        $region20: #{tpu_custom_call.1} parent=11 // pred_fallthru
          _
      $region12: #{tpu_custom_call.1} parent=5 // pred_fallthru
        _
      %p185 = scmp.lt.s32.totalorder %s18, 2
      // Predicated region
      $region21: #{tpu_custom_call.1} parent=5 // pred_check
        %p186 = pneg %p185
      $region22: #{tpu_custom_call.1} parent=5 // pred_check_branch
        %188 = sbr.rel (%p186) target = $region24
      $region23: #{tpu_custom_call.1} parent=5 // pred_region
        // Predicated region
        $region25: #{tpu_custom_call.1} parent=23 // pred_check
          %p189 = pneg %p38
        $region26: #{tpu_custom_call.1} parent=23 // pred_check_branch
          %191 = sbr.rel (%p189) target = $region28
        $region27: #{tpu_custom_call.1} parent=23 // pred_region
          %s192 = smul.u32 8, %s18
          %p193 = scmp.lt.s32.totalorder %s192, 15
          %s194 = scalar_select %p193, %s192, 15
          %s195 = smul.addr %s194, 8
          %s196 = scalar_lea.vmem %s0, %s195
          %s197 = smul.u32 8, %s18
        $region28: #{tpu_custom_call.1} parent=23 // pred_fallthru
          _
      $region24: #{tpu_custom_call.1} parent=5 // pred_fallthru
        _
      %p198 = scmp.le.s32.totalorder 1, %s18
      %p199 = scmp.lt.s32.totalorder %s18, 3
      %p200 = pnand %p198, %p199
      %p201 = pneg %p200
      // Predicated region
      $region29: #{tpu_custom_call.1} parent=5 // pred_check
        _
      $region30: #{tpu_custom_call.1} parent=5 // pred_check_branch
        %203 = sbr.rel (%p200) target = $region32
      $region31: #{tpu_custom_call.1} parent=5 // pred_region
        %s204 = ssub.s32 %s18, 1
        %s205 = smul.u32 8, %s23
        %p206 = scmp.lt.s32.totalorder %s205, 15
        %s207 = scalar_select %p206, %s205, 15
        %s208 = smul.addr %s207, 8
        %s209 = scalar_lea.vmem %s0, %s208
        %p210 = pneg %p44
        %p211 = pneg %p41
        %p212 = pneg %p65
        %p213 = pneg %p62
        %p214 = pneg %p86
        %p215 = pneg %p83
        %p216 = pneg %p112
        %p217 = pneg %p109
        %s218 = sand.u32 %s99, 1
        %s219 = scalar_lea.sflag [#allocation3], %s218
        %s220 = sand.u32 %s99, 1
        %s221 = scalar_lea.vmem [#allocation2], %s220
        %p222 = pneg %p138
        %p223 = pneg %p135
        %s224 = smul.u32 8, %s23
        %p225 = scmp.lt.s32.totalorder %s224, 15
        %s226 = scalar_select %p225, %s224, 15
        %s227 = smul.addr %s226, 8
        %s228 = scalar_lea.vmem %s4, %s227
        %p229 = pneg %p164
        %p230 = pneg %p161
        %s231 = sand.u32 %s151, 1
        %s232 = scalar_lea.sflag [#allocation5], %s231
        %s233 = sand.u32 %s151, 1
        %s234 = scalar_lea.vmem [#allocation4], %s233
        %s235 = smul.u32 8, %s23
        %p236 = scmp.lt.s32.totalorder %s235, 15
        %s237 = scalar_select %p236, %s235, 15
        %s238 = smul.addr %s237, 8
        %s239 = scalar_lea.vmem %s0, %s238
        %s240 = smul.u32 8, %s23
        %s241 = smul.u32 8, %s23
        %p242 = scmp.lt.s32.totalorder %s241, 15
        %s243 = scalar_select %p242, %s241, 15
        %s244 = smul.addr %s243, 8
        %s245 = scalar_lea.vmem %s4, %s244
        %s246 = smul.u32 8, %s23
        %v247 = vld [vmem:[%s239] sm:$0xff]
        %v248 = vld [vmem:[%s239 + $0x8] sm:$0xff]
        %v249 = vld [vmem:[%s239 + $0x10] sm:$0xff]
        %v250 = vld [vmem:[%s239 + $0x18] sm:$0xff]
        %v251 = vld [vmem:[%s239 + $0x20] sm:$0xff]
        %v252 = vld [vmem:[%s239 + $0x28] sm:$0xff]
        %v253 = vld [vmem:[%s239 + $0x30] sm:$0xff]
        %v254 = vld [vmem:[%s239 + $0x38] sm:$0xff]
        %v255 = vld [vmem:[%s1] sm:$0xff]
        %v256 = vld [vmem:[%s1 + $0x8] sm:$0xff]
        %v257 = vld [vmem:[%s1 + $0x10] sm:$0xff]
        %v258 = vld [vmem:[%s1 + $0x18] sm:$0xff]
        %v259 = vld [vmem:[%s1 + $0x20] sm:$0xff]
        %v260 = vld [vmem:[%s1 + $0x28] sm:$0xff]
        %v261 = vld [vmem:[%s1 + $0x30] sm:$0xff]
        %v262 = vld [vmem:[%s1 + $0x38] sm:$0xff]
        %v263 = vld [vmem:[%s1 + $0x40] sm:$0xff]
        %v264 = vld [vmem:[%s1 + $0x48] sm:$0xff]
        %v265 = vld [vmem:[%s1 + $0x50] sm:$0xff]
        %v266 = vld [vmem:[%s1 + $0x58] sm:$0xff]
        %v267 = vld [vmem:[%s1 + $0x60] sm:$0xff]
        %v268 = vld [vmem:[%s1 + $0x68] sm:$0xff]
        %v269 = vld [vmem:[%s1 + $0x70] sm:$0xff]
        %v270 = vld [vmem:[%s1 + $0x78] sm:$0xff]
        %v271 = vld [vmem:[%s2] sm:$0xff]
        %v272 = vld [vmem:[%s2 + $0x8] sm:$0xff]
        %v273 = vld [vmem:[%s2 + $0x10] sm:$0xff]
        %v274 = vld [vmem:[%s2 + $0x18] sm:$0xff]
        %v275 = vld [vmem:[%s2 + $0x20] sm:$0xff]
        %v276 = vld [vmem:[%s2 + $0x28] sm:$0xff]
        %v277 = vld [vmem:[%s2 + $0x30] sm:$0xff]
        %v278 = vld [vmem:[%s2 + $0x38] sm:$0xff]
        %v279 = vld [vmem:[%s2 + $0x40] sm:$0xff]
        %v280 = vld [vmem:[%s2 + $0x48] sm:$0xff]
        %v281 = vld [vmem:[%s2 + $0x50] sm:$0xff]
        %v282 = vld [vmem:[%s2 + $0x58] sm:$0xff]
        %v283 = vld [vmem:[%s2 + $0x60] sm:$0xff]
        %v284 = vld [vmem:[%s2 + $0x68] sm:$0xff]
        %v285 = vld [vmem:[%s2 + $0x70] sm:$0xff]
        %v286 = vld [vmem:[%s2 + $0x78] sm:$0xff]
        %vm287 = vcmask 261120
        %v289 = vsel %vm287, %v255, 0
        %v292 = vsel %vm287, %v256, 0
        %v295 = vsel %vm287, %v257, 0
        %v298 = vsel %vm287, %v258, 0
        %v301 = vsel %vm287, %v259, 0
        %v304 = vsel %vm287, %v260, 0
        %v307 = vsel %vm287, %v261, 0
        %v310 = vsel %vm287, %v262, 0
        %v313 = vsel %vm287, %v263, 0
        %v316 = vsel %vm287, %v264, 0
        %v319 = vsel %vm287, %v265, 0
        %v322 = vsel %vm287, %v266, 0
        %v325 = vsel %vm287, %v267, 0
        %v328 = vsel %vm287, %v268, 0
        %v331 = vsel %vm287, %v269, 0
        %v334 = vsel %vm287, %v270, 0
        %v337 = vsel %vm287, %v247, 0
        %v340 = vsel %vm287, %v248, 0
        %v343 = vsel %vm287, %v249, 0
        %v346 = vsel %vm287, %v250, 0
        %v349 = vsel %vm287, %v251, 0
        %v352 = vsel %vm287, %v252, 0
        %v355 = vsel %vm287, %v253, 0
        %v358 = vsel %vm287, %v254, 0
        %360 = vmatprep.subr.mxu0 0.0
        %361 = vmatpush1.xpose.msra.mxu0 %v337
        %362 = vmatprep.subr.mxu0 0.0
        %363 = vmatpush1.xpose.msra.mxu0 %v340
        %364 = vmatprep.subr.mxu0 0.0
        %365 = vmatpush1.xpose.msra.mxu0 %v343
        %366 = vmatprep.subr.mxu0 0.0
        %367 = vmatpush1.xpose.msra.mxu0 %v346
        %368 = vmatprep.subr.mxu0 0.0
        %369 = vmatpush1.xpose.msra.mxu0 %v349
        %370 = vmatprep.subr.mxu0 0.0
        %371 = vmatpush1.xpose.msra.mxu0 %v352
        %372 = vmatprep.subr.mxu0 0.0
        %373 = vmatpush1.xpose.msra.mxu0 %v355
        %374 = vmatprep.subr.mxu0 0.0
        %375 = vmatpush1.xpose.msra.mxu0 %v358
        %376 = vmatprep.subr.mxu0 0.0
        %377 = vmatpush1.xpose.msra.mxu0 0.0
        %378 = vmatprep.subr.mxu0 0.0
        %379 = vmatpush1.xpose.msra.mxu0 0.0
        %380 = vmatprep.subr.mxu0 0.0
        %381 = vmatpush1.xpose.msra.mxu0 0.0
        %382 = vmatprep.subr.mxu0 0.0
        %383 = vmatpush1.xpose.msra.mxu0 0.0
        %384 = vmatprep.subr.mxu0 0.0
        %385 = vmatpush1.xpose.msra.mxu0 0.0
        %386 = vmatprep.subr.mxu0 0.0
        %387 = vmatpush1.xpose.msra.mxu0 0.0
        %388 = vmatprep.subr.mxu0 0.0
        %389 = vmatpush1.xpose.msra.mxu0 0.0
        %390 = vmatprep.subr.mxu0 0.0
        %391 = vmatpush1.xpose.msra.mxu0 0.0
        %392 = vmatprep.subr.mxu0 0.0
        %393 = vmatpush1.xpose.msra.mxu0 0.0
        %394 = vmatprep.subr.mxu0 0.0
        %395 = vmatpush1.xpose.msra.mxu0 0.0
        %396 = vmatprep.subr.mxu0 0.0
        %397 = vmatpush1.xpose.msra.mxu0 0.0
        %398 = vmatprep.subr.mxu0 0.0
        %399 = vmatpush1.xpose.msra.mxu0 0.0
        %400 = vmatprep.subr.mxu0 0.0
        %401 = vmatpush1.xpose.msra.mxu0 0.0
        %402 = vmatprep.subr.mxu0 0.0
        %403 = vmatpush1.xpose.msra.mxu0 0.0
        %404 = vmatprep.subr.mxu0 0.0
        %405 = vmatpush1.xpose.msra.mxu0 0.0
        %406 = vmatprep.subr.mxu0 0.0
        %407 = vmatpush1.xpose.msra.mxu0 0.0
        %408 = vmatprep.subr.mxu0 0.0
        %409 = vmatpush1.xpose.msra.mxu0 0.0
        %410 = vmatprep.subr.mxu0 0.0
        %411 = vmatpush1.xpose.msra.mxu0 0.0
        %412 = vmatprep.subr.mxu0 0.0
        %413 = vmatpush1.xpose.msra.mxu0 0.0
        %414 = vmatprep.subr.mxu0 0.0
        %415 = vmatpush1.xpose.msra.mxu0 0.0
        %416 = vmatprep.subr.mxu0 0.0
        %417 = vmatpush1.xpose.msra.mxu0 0.0
        %418 = vmatprep.subr.mxu0 0.0
        %419 = vmatpush1.xpose.msra.mxu0 0.0
        %420 = vmatprep.subr.mxu0 0.0
        %421 = vmatpush1.xpose.msra.mxu0 0.0
        %422 = vmatprep.subr.mxu0 0.0
        %423 = vmatpush1.xpose.msra.mxu0 0.0
        %424 = vmatprep.mubr.f32.mxu0 0.0
        %425 = vmatmul.mubr.f32.gmra.mrb[0].mxu0 %v289
        %v426 = vpop.f32.mrb[0].mxu0
        %v427 = vadd.f32 0.0, %v426
        %v428 = vpop.f32.mrb[0].mxu0
        %429 = vmatprep.mubr.f32.mxu0 0.0
        %430 = vmatmul.mubr.f32.gmra.mrb[0].mxu0 %v292
        %v431 = vpop.f32.mrb[0].mxu0
        %v432 = vadd.f32 0.0, %v431
        %v433 = vpop.f32.mrb[0].mxu0
        %434 = vmatprep.mubr.f32.mxu0 0.0
        %435 = vmatmul.mubr.f32.gmra.mrb[0].mxu0 %v295
        %v436 = vpop.f32.mrb[0].mxu0
        %v437 = vadd.f32 0.0, %v436
        %v438 = vpop.f32.mrb[0].mxu0
        %439 = vmatprep.mubr.f32.mxu0 0.0
        %440 = vmatmul.mubr.f32.gmra.mrb[0].mxu0 %v298
        %v441 = vpop.f32.mrb[0].mxu0
        %v442 = vadd.f32 0.0, %v441
        %v443 = vpop.f32.mrb[0].mxu0
        %444 = vmatprep.mubr.f32.mxu0 0.0
        %445 = vmatmul.mubr.f32.gmra.mrb[0].mxu0 %v301
        %v446 = vpop.f32.mrb[0].mxu0
        %v447 = vadd.f32 0.0, %v446
        %v448 = vpop.f32.mrb[0].mxu0
        %449 = vmatprep.mubr.f32.mxu0 0.0
        %450 = vmatmul.mubr.f32.gmra.mrb[0].mxu0 %v304
        %v451 = vpop.f32.mrb[0].mxu0
        %v452 = vadd.f32 0.0, %v451
        %v453 = vpop.f32.mrb[0].mxu0
        %454 = vmatprep.mubr.f32.mxu0 0.0
        %455 = vmatmul.mubr.f32.gmra.mrb[0].mxu0 %v307
        %v456 = vpop.f32.mrb[0].mxu0
        %v457 = vadd.f32 0.0, %v456
        %v458 = vpop.f32.mrb[0].mxu0
        %459 = vmatprep.mubr.f32.mxu0 0.0
        %460 = vmatmul.mubr.f32.gmra.mrb[0].mxu0 %v310
        %v461 = vpop.f32.mrb[0].mxu0
        %v462 = vadd.f32 0.0, %v461
        %v463 = vpop.f32.mrb[0].mxu0
        %464 = vmatprep.mubr.f32.mxu0 0.0
        %465 = vmatmul.mubr.f32.gmra.mrb[0].mxu0 %v313
        %v466 = vpop.f32.mrb[0].mxu0
        %v467 = vadd.f32 0.0, %v466
        %v468 = vpop.f32.mrb[0].mxu0
        %469 = vmatprep.mubr.f32.mxu0 0.0
        %470 = vmatmul.mubr.f32.gmra.mrb[0].mxu0 %v316
        %v471 = vpop.f32.mrb[0].mxu0
        %v472 = vadd.f32 0.0, %v471
        %v473 = vpop.f32.mrb[0].mxu0
        %474 = vmatprep.mubr.f32.mxu0 0.0
        %475 = vmatmul.mubr.f32.gmra.mrb[0].mxu0 %v319
        %v476 = vpop.f32.mrb[0].mxu0
        %v477 = vadd.f32 0.0, %v476
        %v478 = vpop.f32.mrb[0].mxu0
        %479 = vmatprep.mubr.f32.mxu0 0.0
        %480 = vmatmul.mubr.f32.gmra.mrb[0].mxu0 %v322
        %v481 = vpop.f32.mrb[0].mxu0
        %v482 = vadd.f32 0.0, %v481
        %v483 = vpop.f32.mrb[0].mxu0
        %484 = vmatprep.mubr.f32.mxu0 0.0
        %485 = vmatmul.mubr.f32.gmra.mrb[0].mxu0 %v325
        %v486 = vpop.f32.mrb[0].mxu0
        %v487 = vadd.f32 0.0, %v486
        %v488 = vpop.f32.mrb[0].mxu0
        %489 = vmatprep.mubr.f32.mxu0 0.0
        %490 = vmatmul.mubr.f32.gmra.mrb[0].mxu0 %v328
        %v491 = vpop.f32.mrb[0].mxu0
        %v492 = vadd.f32 0.0, %v491
        %v493 = vpop.f32.mrb[0].mxu0
        %494 = vmatprep.mubr.f32.mxu0 0.0
        %495 = vmatmul.mubr.f32.gmra.mrb[0].mxu0 %v331
        %v496 = vpop.f32.mrb[0].mxu0
        %v497 = vadd.f32 0.0, %v496
        %v498 = vpop.f32.mrb[0].mxu0
        %499 = vmatprep.mubr.f32.mxu0 0.0
        %500 = vmatmul.mubr.f32.gmra.mrb[0].mxu0 %v334
        %v501 = vpop.f32.mrb[0].mxu0
        %v502 = vadd.f32 0.0, %v501
        %v503 = vpop.f32.mrb[0].mxu0
        %504 = vdwg.mxu0
        %506 = vset.pattern.permute.xlu0 0
        %507 = vperm.xlu0 %506, %v271
        %v508 = vpop.permute.xlu0 %507
        %511 = vset.pattern.permute.xlu0 0
        %512 = vperm.xlu0 %511, %v272
        %v513 = vpop.permute.xlu0 %512
        %516 = vset.pattern.permute.xlu0 0
        %517 = vperm.xlu0 %516, %v273
        %v518 = vpop.permute.xlu0 %517
        %521 = vset.pattern.permute.xlu0 0
        %522 = vperm.xlu0 %521, %v274
        %v523 = vpop.permute.xlu0 %522
        %526 = vset.pattern.permute.xlu0 0
        %527 = vperm.xlu0 %526, %v275
        %v528 = vpop.permute.xlu0 %527
        %531 = vset.pattern.permute.xlu0 0
        %532 = vperm.xlu0 %531, %v276
        %v533 = vpop.permute.xlu0 %532
        %536 = vset.pattern.permute.xlu0 0
        %537 = vperm.xlu0 %536, %v277
        %v538 = vpop.permute.xlu0 %537
        %541 = vset.pattern.permute.xlu0 0
        %542 = vperm.xlu0 %541, %v278
        %v543 = vpop.permute.xlu0 %542
        %546 = vset.pattern.permute.xlu0 0
        %547 = vperm.xlu0 %546, %v279
        %v548 = vpop.permute.xlu0 %547
        %551 = vset.pattern.permute.xlu0 0
        %552 = vperm.xlu0 %551, %v280
        %v553 = vpop.permute.xlu0 %552
        %556 = vset.pattern.permute.xlu0 0
        %557 = vperm.xlu0 %556, %v281
        %v558 = vpop.permute.xlu0 %557
        %561 = vset.pattern.permute.xlu0 0
        %562 = vperm.xlu0 %561, %v282
        %v563 = vpop.permute.xlu0 %562
        %566 = vset.pattern.permute.xlu0 0
        %567 = vperm.xlu0 %566, %v283
        %v568 = vpop.permute.xlu0 %567
        %571 = vset.pattern.permute.xlu0 0
        %572 = vperm.xlu0 %571, %v284
        %v573 = vpop.permute.xlu0 %572
        %576 = vset.pattern.permute.xlu0 0
        %577 = vperm.xlu0 %576, %v285
        %v578 = vpop.permute.xlu0 %577
        %581 = vset.pattern.permute.xlu0 0
        %582 = vperm.xlu0 %581, %v286
        %v583 = vpop.permute.xlu0 %582
        %v585 = vsub.f32 %v427, %v508
        %v586 = vsub.f32 %v432, %v513
        %v587 = vsub.f32 %v437, %v518
        %v588 = vsub.f32 %v442, %v523
        %v589 = vsub.f32 %v447, %v528
        %v590 = vsub.f32 %v452, %v533
        %v591 = vsub.f32 %v457, %v538
        %v592 = vsub.f32 %v462, %v543
        %v593 = vsub.f32 %v467, %v548
        %v594 = vsub.f32 %v472, %v553
        %v595 = vsub.f32 %v477, %v558
        %v596 = vsub.f32 %v482, %v563
        %v597 = vsub.f32 %v487, %v568
        %v598 = vsub.f32 %v492, %v573
        %v599 = vsub.f32 %v497, %v578
        %v600 = vsub.f32 %v502, %v583
        %vm601 = vcmask 523264
        %v602 = vsel %vm601, %v585, -inf
        %v603 = vsel %vm601, %v586, -inf
        %v604 = vsel %vm601, %v587, -inf
        %v605 = vsel %vm601, %v588, -inf
        %v606 = vsel %vm601, %v589, -inf
        %v607 = vmax.f32 %v602, %v606
        %v608 = vsel %vm601, %v590, -inf
        %v609 = vmax.f32 %v603, %v608
        %v610 = vsel %vm601, %v591, -inf
        %v611 = vmax.f32 %v604, %v610
        %v612 = vsel %vm601, %v592, -inf
        %v613 = vmax.f32 %v605, %v612
        %v614 = vsel %vm601, %v593, -inf
        %v615 = vmax.f32 %v607, %v614
        %v616 = vsel %vm601, %v594, -inf
        %v617 = vmax.f32 %v609, %v616
        %v618 = vsel %vm601, %v595, -inf
        %v619 = vmax.f32 %v611, %v618
        %v620 = vsel %vm601, %v596, -inf
        %v621 = vmax.f32 %v613, %v620
        %v622 = vsel %vm601, %v597, -inf
        %v623 = vmax.f32 %v615, %v622
        %v624 = vsel %vm601, %v598, -inf
        %v625 = vmax.f32 %v617, %v624
        %v626 = vsel %vm601, %v599, -inf
        %v627 = vmax.f32 %v619, %v626
        %v628 = vsel %vm601, %v600, -inf
        %v629 = vmax.f32 %v621, %v628
        %v630 = vmax.f32 %v623, %v625
        %v631 = vmax.f32 %v627, %v629
        %v632 = vmax.f32 %v630, %v631
        %v633 = vrot.slane %v632, 4
        %v634 = vmax.f32 %v632, %v633
        %v635 = vrot.slane %v634, 2
        %v636 = vmax.f32 %v634, %v635
        %v637 = vrot.slane %v636, 1
        %v638 = vmax.f32 %v636, %v637
        %v639 = vlaneseq
        %v640 = vshrl.u32 %v639, 7
        %v641 = vadd.s32 %v640, 8
        %v642 = vadd.s32 %v640, 16
        %v643 = vadd.s32 %v640, 24
        %v644 = vadd.s32 %v640, 32
        %v645 = vadd.s32 %v640, 40
        %v646 = vadd.s32 %v640, 48
        %v647 = vadd.s32 %v640, 56
        %v648 = vadd.s32 %v640, 64
        %v649 = vadd.s32 %v640, 72
        %v650 = vadd.s32 %v640, 80
        %v651 = vadd.s32 %v640, 88
        %v652 = vadd.s32 %v640, 96
        %v653 = vadd.s32 %v640, 104
        %v654 = vadd.s32 %v640, 112
        %v655 = vadd.s32 %v640, 120
        %vm656 = vcmp.eq.f32.partialorder %v585, %v638
        %vm657 = vcmp.eq.f32.partialorder %v586, %v638
        %vm658 = vcmp.eq.f32.partialorder %v587, %v638
        %vm659 = vcmp.eq.f32.partialorder %v588, %v638
        %vm660 = vcmp.eq.f32.partialorder %v589, %v638
        %vm661 = vcmp.eq.f32.partialorder %v590, %v638
        %vm662 = vcmp.eq.f32.partialorder %v591, %v638
        %vm663 = vcmp.eq.f32.partialorder %v592, %v638
        %vm664 = vcmp.eq.f32.partialorder %v593, %v638
        %vm665 = vcmp.eq.f32.partialorder %v594, %v638
        %vm666 = vcmp.eq.f32.partialorder %v595, %v638
        %vm667 = vcmp.eq.f32.partialorder %v596, %v638
        %vm668 = vcmp.eq.f32.partialorder %v597, %v638
        %vm669 = vcmp.eq.f32.partialorder %v598, %v638
        %vm670 = vcmp.eq.f32.partialorder %v599, %v638
        %vm671 = vcmp.eq.f32.partialorder %v600, %v638
        %v672 = vsel %vm656, %v640, 128
        %v673 = vsel %vm657, %v641, 128
        %v674 = vsel %vm658, %v642, 128
        %v675 = vsel %vm659, %v643, 128
        %v676 = vsel %vm660, %v644, 128
        %v677 = vsel %vm661, %v645, 128
        %v678 = vsel %vm662, %v646, 128
        %v679 = vsel %vm663, %v647, 128
        %v680 = vsel %vm664, %v648, 128
        %v681 = vsel %vm665, %v649, 128
        %v682 = vsel %vm666, %v650, 128
        %v683 = vsel %vm667, %v651, 128
        %v684 = vsel %vm668, %v652, 128
        %v685 = vsel %vm669, %v653, 128
        %v686 = vsel %vm670, %v654, 128
        %v687 = vsel %vm671, %v655, 128
        %v688 = vsel %vm601, %v672, 2147483647
        %v689 = vsel %vm601, %v673, 2147483647
        %v690 = vsel %vm601, %v674, 2147483647
        %v691 = vsel %vm601, %v675, 2147483647
        %v692 = vsel %vm601, %v676, 2147483647
        %vm693 = vcmp.lt.s32.totalorder %v688, %v692
        %v694 = vsel %vm693, %v688, %v692
        %v695 = vsel %vm601, %v677, 2147483647
        %vm696 = vcmp.lt.s32.totalorder %v689, %v695
        %v697 = vsel %vm696, %v689, %v695
        %v698 = vsel %vm601, %v678, 2147483647
        %vm699 = vcmp.lt.s32.totalorder %v690, %v698
        %v700 = vsel %vm699, %v690, %v698
        %v701 = vsel %vm601, %v679, 2147483647
        %vm702 = vcmp.lt.s32.totalorder %v691, %v701
        %v703 = vsel %vm702, %v691, %v701
        %v704 = vsel %vm601, %v680, 2147483647
        %vm705 = vcmp.lt.s32.totalorder %v694, %v704
        %v706 = vsel %vm705, %v694, %v704
        %v707 = vsel %vm601, %v681, 2147483647
        %vm708 = vcmp.lt.s32.totalorder %v697, %v707
        %v709 = vsel %vm708, %v697, %v707
        %v710 = vsel %vm601, %v682, 2147483647
        %vm711 = vcmp.lt.s32.totalorder %v700, %v710
        %v712 = vsel %vm711, %v700, %v710
        %v713 = vsel %vm601, %v683, 2147483647
        %vm714 = vcmp.lt.s32.totalorder %v703, %v713
        %v715 = vsel %vm714, %v703, %v713
        %v716 = vsel %vm601, %v684, 2147483647
        %vm717 = vcmp.lt.s32.totalorder %v706, %v716
        %v718 = vsel %vm717, %v706, %v716
        %v719 = vsel %vm601, %v685, 2147483647
        %vm720 = vcmp.lt.s32.totalorder %v709, %v719
        %v721 = vsel %vm720, %v709, %v719
        %v722 = vsel %vm601, %v686, 2147483647
        %vm723 = vcmp.lt.s32.totalorder %v712, %v722
        %v724 = vsel %vm723, %v712, %v722
        %v725 = vsel %vm601, %v687, 2147483647
        %vm726 = vcmp.lt.s32.totalorder %v715, %v725
        %v727 = vsel %vm726, %v715, %v725
        %vm728 = vcmp.lt.s32.totalorder %v718, %v721
        %v729 = vsel %vm728, %v718, %v721
        %vm730 = vcmp.lt.s32.totalorder %v724, %v727
        %v731 = vsel %vm730, %v724, %v727
        %vm732 = vcmp.lt.s32.totalorder %v729, %v731
        %v733 = vsel %vm732, %v729, %v731
        %v734 = vrot.slane %v733, 4
        %vm735 = vcmp.lt.s32.totalorder %v733, %v734
        %v736 = vsel %vm735, %v733, %v734
        %v737 = vrot.slane %v736, 2
        %vm738 = vcmp.lt.s32.totalorder %v736, %v737
        %v739 = vsel %vm738, %v736, %v737
        %v740 = vrot.slane %v739, 1
        %vm741 = vcmp.lt.s32.totalorder %v739, %v740
        %v742 = vsel %vm741, %v739, %v740
        %vm743 = vcmp.eq.s32.totalorder %v742, %v640
        %vm744 = vcmp.eq.s32.totalorder %v742, %v641
        %vm745 = vcmp.eq.s32.totalorder %v742, %v642
        %vm746 = vcmp.eq.s32.totalorder %v742, %v643
        %vm747 = vcmp.eq.s32.totalorder %v742, %v644
        %vm748 = vcmp.eq.s32.totalorder %v742, %v645
        %vm749 = vcmp.eq.s32.totalorder %v742, %v646
        %vm750 = vcmp.eq.s32.totalorder %v742, %v647
        %vm751 = vcmp.eq.s32.totalorder %v742, %v648
        %vm752 = vcmp.eq.s32.totalorder %v742, %v649
        %vm753 = vcmp.eq.s32.totalorder %v742, %v650
        %vm754 = vcmp.eq.s32.totalorder %v742, %v651
        %vm755 = vcmp.eq.s32.totalorder %v742, %v652
        %vm756 = vcmp.eq.s32.totalorder %v742, %v653
        %vm757 = vcmp.eq.s32.totalorder %v742, %v654
        %vm758 = vcmp.eq.s32.totalorder %v742, %v655
        %v759 = vsel %vm743, 1, 0
        %v760 = vsel %vm744, 1, 0
        %v761 = vsel %vm745, 1, 0
        %v762 = vsel %vm746, 1, 0
        %v763 = vsel %vm747, 1, 0
        %v764 = vsel %vm748, 1, 0
        %v765 = vsel %vm749, 1, 0
        %v766 = vsel %vm750, 1, 0
        %v767 = vsel %vm751, 1, 0
        %v768 = vsel %vm752, 1, 0
        %v769 = vsel %vm753, 1, 0
        %v770 = vsel %vm754, 1, 0
        %v771 = vsel %vm755, 1, 0
        %v772 = vsel %vm756, 1, 0
        %v773 = vsel %vm757, 1, 0
        %v774 = vsel %vm758, 1, 0
        %v775 = vcvt.s32.f32 %v759
        %v776 = vcvt.s32.f32 %v760
        %v777 = vcvt.s32.f32 %v761
        %v778 = vcvt.s32.f32 %v762
        %v779 = vcvt.s32.f32 %v763
        %v780 = vcvt.s32.f32 %v764
        %v781 = vcvt.s32.f32 %v765
        %v782 = vcvt.s32.f32 %v766
        %v783 = vcvt.s32.f32 %v767
        %v784 = vcvt.s32.f32 %v768
        %v785 = vcvt.s32.f32 %v769
        %v786 = vcvt.s32.f32 %v770
        %v787 = vcvt.s32.f32 %v771
        %v788 = vcvt.s32.f32 %v772
        %v789 = vcvt.s32.f32 %v773
        %v790 = vcvt.s32.f32 %v774
        %791 = vxpose.xlu0.b32.start [1/16] %v775, 128
        %792 = vxpose.xlu0.b32.cont [2/16] %v776, 128
        %793 = vxpose.xlu0.b32.cont [3/16] %v777, 128
        %794 = vxpose.xlu0.b32.cont [4/16] %v778, 128
        %795 = vxpose.xlu0.b32.cont [5/16] %v779, 128
        %796 = vxpose.xlu0.b32.cont [6/16] %v780, 128
        %797 = vxpose.xlu0.b32.cont [7/16] %v781, 128
        %798 = vxpose.xlu0.b32.cont [8/16] %v782, 128
        %799 = vxpose.xlu0.b32.cont [9/16] %v783, 128
        %800 = vxpose.xlu0.b32.cont [10/16] %v784, 128
        %801 = vxpose.xlu0.b32.cont [11/16] %v785, 128
        %802 = vxpose.xlu0.b32.cont [12/16] %v786, 128
        %803 = vxpose.xlu0.b32.cont [13/16] %v787, 128
        %804 = vxpose.xlu0.b32.cont [14/16] %v788, 128
        %805 = vxpose.xlu0.b32.cont [15/16] %v789, 128
        %806 = vxpose.xlu0.b32.end [16/16] %v790, 128
        %v807 = vpop.trf.xlu0
        %v808 = vpop.trf.xlu0
        %v809 = vpop.trf.xlu0
        %v810 = vpop.trf.xlu0
        %v811 = vpop.trf.xlu0
        %v812 = vpop.trf.xlu0
        %v813 = vpop.trf.xlu0
        %v814 = vpop.trf.xlu0
        %v815 = vpop.trf.xlu0
        %v816 = vpop.trf.xlu0
        %v817 = vpop.trf.xlu0
        %v818 = vpop.trf.xlu0
        %v819 = vpop.trf.xlu0
        %v820 = vpop.trf.xlu0
        %v821 = vpop.trf.xlu0
        %v822 = vpop.trf.xlu0
        %823 = vmatprep.subr.mxu0 0.0
        %824 = vmatpush1.msra.mxu0 %v255
        %825 = vmatprep.subr.mxu0 0.0
        %826 = vmatpush1.msra.mxu0 %v256
        %827 = vmatprep.subr.mxu0 0.0
        %828 = vmatpush1.msra.mxu0 %v257
        %829 = vmatprep.subr.mxu0 0.0
        %830 = vmatpush1.msra.mxu0 %v258
        %831 = vmatprep.subr.mxu0 0.0
        %832 = vmatpush1.msra.mxu0 %v259
        %833 = vmatprep.subr.mxu0 0.0
        %834 = vmatpush1.msra.mxu0 %v260
        %835 = vmatprep.subr.mxu0 0.0
        %836 = vmatpush1.msra.mxu0 %v261
        %837 = vmatprep.subr.mxu0 0.0
        %838 = vmatpush1.msra.mxu0 %v262
        %839 = vmatprep.subr.mxu0 0.0
        %840 = vmatpush1.msra.mxu0 %v263
        %841 = vmatprep.subr.mxu0 0.0
        %842 = vmatpush1.msra.mxu0 %v264
        %843 = vmatprep.subr.mxu0 0.0
        %844 = vmatpush1.msra.mxu0 %v265
        %845 = vmatprep.subr.mxu0 0.0
        %846 = vmatpush1.msra.mxu0 %v266
        %847 = vmatprep.subr.mxu0 0.0
        %848 = vmatpush1.msra.mxu0 %v267
        %849 = vmatprep.subr.mxu0 0.0
        %850 = vmatpush1.msra.mxu0 %v268
        %851 = vmatprep.subr.mxu0 0.0
        %852 = vmatpush1.msra.mxu0 %v269
        %853 = vmatprep.subr.mxu0 0.0
        %854 = vmatpush1.msra.mxu0 %v270
        %855 = vmatprep.subr.mxu0 0.0
        %856 = vmatpush1.msra.mxu0 0.0
        %857 = vmatprep.subr.mxu0 0.0
        %858 = vmatpush1.msra.mxu0 0.0
        %859 = vmatprep.subr.mxu0 0.0
        %860 = vmatpush1.msra.mxu0 0.0
        %861 = vmatprep.subr.mxu0 0.0
        %862 = vmatpush1.msra.mxu0 0.0
        %863 = vmatprep.subr.mxu0 0.0
        %864 = vmatpush1.msra.mxu0 0.0
        %865 = vmatprep.subr.mxu0 0.0
        %866 = vmatpush1.msra.mxu0 0.0
        %867 = vmatprep.subr.mxu0 0.0
        %868 = vmatpush1.msra.mxu0 0.0
        %869 = vmatprep.subr.mxu0 0.0
        %870 = vmatpush1.msra.mxu0 0.0
        %871 = vmatprep.subr.mxu0 0.0
        %872 = vmatpush1.msra.mxu0 0.0
        %873 = vmatprep.subr.mxu0 0.0
        %874 = vmatpush1.msra.mxu0 0.0
        %875 = vmatprep.subr.mxu0 0.0
        %876 = vmatpush1.msra.mxu0 0.0
        %877 = vmatprep.subr.mxu0 0.0
        %878 = vmatpush1.msra.mxu0 0.0
        %879 = vmatprep.subr.mxu0 0.0
        %880 = vmatpush1.msra.mxu0 0.0
        %881 = vmatprep.subr.mxu0 0.0
        %882 = vmatpush1.msra.mxu0 0.0
        %883 = vmatprep.subr.mxu0 0.0
        %884 = vmatpush1.msra.mxu0 0.0
        %885 = vmatprep.subr.mxu0 0.0
        %886 = vmatpush1.msra.mxu0 0.0
        %887 = vmatprep.mubr.f32.mxu0 0.0
        %888 = vmatmul.mubr.f32.gmra.mrb[0].mxu0 %v807
        %v889 = vpop.f32.mrb[0].mxu0
        %v890 = vadd.f32 0.0, %v889
        %v891 = vpop.f32.mrb[0].mxu0
        %892 = vmatprep.mubr.f32.mxu0 0.0
        %893 = vmatmul.mubr.f32.gmra.mrb[0].mxu0 %v808
        %v894 = vpop.f32.mrb[0].mxu0
        %v895 = vadd.f32 0.0, %v894
        %v896 = vpop.f32.mrb[0].mxu0
        %897 = vmatprep.mubr.f32.mxu0 0.0
        %898 = vmatmul.mubr.f32.gmra.mrb[0].mxu0 %v809
        %v899 = vpop.f32.mrb[0].mxu0
        %v900 = vadd.f32 0.0, %v899
        %v901 = vpop.f32.mrb[0].mxu0
        %902 = vmatprep.mubr.f32.mxu0 0.0
        %903 = vmatmul.mubr.f32.gmra.mrb[0].mxu0 %v810
        %v904 = vpop.f32.mrb[0].mxu0
        %v905 = vadd.f32 0.0, %v904
        %v906 = vpop.f32.mrb[0].mxu0
        %907 = vmatprep.mubr.f32.mxu0 0.0
        %908 = vmatmul.mubr.f32.gmra.mrb[0].mxu0 %v811
        %v909 = vpop.f32.mrb[0].mxu0
        %v910 = vadd.f32 0.0, %v909
        %v911 = vpop.f32.mrb[0].mxu0
        %912 = vmatprep.mubr.f32.mxu0 0.0
        %913 = vmatmul.mubr.f32.gmra.mrb[0].mxu0 %v812
        %v914 = vpop.f32.mrb[0].mxu0
        %v915 = vadd.f32 0.0, %v914
        %v916 = vpop.f32.mrb[0].mxu0
        %917 = vmatprep.mubr.f32.mxu0 0.0
        %918 = vmatmul.mubr.f32.gmra.mrb[0].mxu0 %v813
        %v919 = vpop.f32.mrb[0].mxu0
        %v920 = vadd.f32 0.0, %v919
        %v921 = vpop.f32.mrb[0].mxu0
        %922 = vmatprep.mubr.f32.mxu0 0.0
        %923 = vmatmul.mubr.f32.gmra.mrb[0].mxu0 %v814
        %v924 = vpop.f32.mrb[0].mxu0
        %v925 = vadd.f32 0.0, %v924
        %v926 = vpop.f32.mrb[0].mxu0
        %927 = vdwg.mxu0
        %vm928 = vcmask 516096
        %929 = vst.msk [vmem:[%s221] sm:$0x1] %vm928, %v742
        %930 = vst.msk [vmem:[%s245] sm:$0xff] %vm287, %v890
        %931 = vst.msk [vmem:[%s245 + $0x8] sm:$0xff] %vm287, %v895
        %932 = vst.msk [vmem:[%s245 + $0x10] sm:$0xff] %vm287, %v900
        %933 = vst.msk [vmem:[%s245 + $0x18] sm:$0xff] %vm287, %v905
        %934 = vst.msk [vmem:[%s245 + $0x20] sm:$0xff] %vm287, %v910
        %935 = vst.msk [vmem:[%s245 + $0x28] sm:$0xff] %vm287, %v915
        %936 = vst.msk [vmem:[%s245 + $0x30] sm:$0xff] %vm287, %v920
        %937 = vst.msk [vmem:[%s245 + $0x38] sm:$0xff] %vm287, %v925
        %v938 = vsub.f32 %v890, %v247
        %v939 = vsub.f32 %v895, %v248
        %v940 = vsub.f32 %v900, %v249
        %v941 = vsub.f32 %v905, %v250
        %v942 = vsub.f32 %v910, %v251
        %v943 = vsub.f32 %v915, %v252
        %v944 = vsub.f32 %v920, %v253
        %v945 = vsub.f32 %v925, %v254
        %v946 = vmul.f32 %v938, %v938
        %v947 = vmul.f32 %v939, %v939
        %v948 = vmul.f32 %v940, %v940
        %v949 = vmul.f32 %v941, %v941
        %v950 = vmul.f32 %v942, %v942
        %v951 = vmul.f32 %v943, %v943
        %v952 = vmul.f32 %v944, %v944
        %v953 = vmul.f32 %v945, %v945
        %v954 = vsel %vm287, %v946, 0.0
        %v955 = vsel %vm287, %v947, 0.0
        %v956 = vadd.f32 %v954, %v955
        %v957 = vsel %vm287, %v948, 0.0
        %v958 = vadd.f32 %v956, %v957
        %v959 = vsel %vm287, %v949, 0.0
        %v960 = vadd.f32 %v958, %v959
        %v961 = vsel %vm287, %v950, 0.0
        %v962 = vadd.f32 %v960, %v961
        %v963 = vsel %vm287, %v951, 0.0
        %v964 = vadd.f32 %v962, %v963
        %v965 = vsel %vm287, %v952, 0.0
        %v966 = vadd.f32 %v964, %v965
        %v967 = vsel %vm287, %v953, 0.0
        %v968 = vadd.f32 %v966, %v967
        %v969 = vrot.slane %v968, 4
        %v970 = vadd.f32 %v968, %v969
        %v971 = vrot.slane %v970, 2
        %v972 = vadd.f32 %v970, %v971
        %v973 = vrot.slane %v972, 1
        %v974 = vadd.f32 %v972, %v973
        %vm975 = vcmask 253952
        %976 = vst.msk [vmem:[%s234] sm:$0x1] %vm975, %v974
        %s977 = sand.u32 %s99, 1
        %s978 = scalar_lea.sflag [#allocation3], %s977
        %s979 = sand.u32 %s99, 1
        %s980 = scalar_lea.vmem [#allocation2], %s979
        %s981 = smul.u32 8, %s23
        %p982 = scmp.lt.s32.totalorder %s981, 15
        %s983 = scalar_select %p982, %s981, 15
        %s984 = smul.addr %s983, 8
        %s985 = scalar_lea.vmem %s4, %s984
        %s986 = sand.u32 %s151, 1
        %s987 = scalar_lea.sflag [#allocation5], %s986
        %s988 = sand.u32 %s151, 1
        %s989 = scalar_lea.vmem [#allocation4], %s988
        // Predicated region
        $region33: #{tpu_custom_call.1} parent=31 // pred_check
          %p990 = pneg %p109
        $region34: #{tpu_custom_call.1} parent=31 // pred_check_branch
          %992 = sbr.rel (%p990) target = $region36
        $region35: #{tpu_custom_call.1} parent=31 // pred_region
          %s994 = ssub.s32 16, 16
          %995 = vsyncadd %s978, %s994
          %s996 = smul.addr %s23, 16
          %s997 = scalar_lea.hbm %s3, %s996
          %s999 = sshll.u32 %s980, 4
          %s1000 = int_to_ptr.vmem [resolvable:$true] %s999
          %1002 = dma.vmem_to_hbm [thread:$0]  %s1000, 16, %s997, %s978
        $region36: #{tpu_custom_call.1} parent=31 // pred_fallthru
          _
        // Predicated region
        $region37: #{tpu_custom_call.1} parent=31 // pred_check
          %p1003 = pneg %p135
        $region38: #{tpu_custom_call.1} parent=31 // pred_check_branch
          %1005 = sbr.rel (%p1003) target = $region40
        $region39: #{tpu_custom_call.1} parent=31 // pred_region
          %s1006 = smul.u32 8, %s23
        $region40: #{tpu_custom_call.1} parent=31 // pred_fallthru
          _
        // Predicated region
        $region41: #{tpu_custom_call.1} parent=31 // pred_check
          %p1007 = pneg %p161
        $region42: #{tpu_custom_call.1} parent=31 // pred_check_branch
          %1009 = sbr.rel (%p1007) target = $region44
        $region43: #{tpu_custom_call.1} parent=31 // pred_region
          %s1011 = ssub.s32 16, 16
          %1012 = vsyncadd %s987, %s1011
          %s1013 = smul.addr %s23, 16
          %s1014 = scalar_lea.hbm %s5, %s1013
          %s1016 = sshll.u32 %s989, 4
          %s1017 = int_to_ptr.vmem [resolvable:$true] %s1016
          %1019 = dma.vmem_to_hbm [thread:$0]  %s1017, 16, %s1014, %s987
        $region44: #{tpu_custom_call.1} parent=31 // pred_fallthru
          _
      $region32: #{tpu_custom_call.1} parent=5 // pred_fallthru
        _
      %p1020 = scmp.le.s32.totalorder 2, %s18
      // Predicated region
      $region45: #{tpu_custom_call.1} parent=5 // pred_check
        %p1021 = pneg %p1020
      $region46: #{tpu_custom_call.1} parent=5 // pred_check_branch
        %1023 = sbr.rel (%p1021) target = $region48
      $region47: #{tpu_custom_call.1} parent=5 // pred_region
        %s1024 = ssub.s32 %s18, 2
        // Predicated region
        $region49: #{tpu_custom_call.1} parent=47 // pred_check
          %p1025 = pneg %p115
        $region50: #{tpu_custom_call.1} parent=47 // pred_check_branch
          %1027 = sbr.rel (%p1025) target = $region52
        $region51: #{tpu_custom_call.1} parent=47 // pred_region
          %s1028 = sand.u32 %s100, 1
          %s1029 = scalar_lea.sflag [#allocation3], %s1028
          %s1030 = sand.u32 %s100, 1
          %s1031 = scalar_lea.vmem [#allocation2], %s1030
          %1032 = dma.done %s1029, 16
        $region52: #{tpu_custom_call.1} parent=47 // pred_fallthru
          _
        // Predicated region
        $region53: #{tpu_custom_call.1} parent=47 // pred_check
          %p1033 = pneg %p141
        $region54: #{tpu_custom_call.1} parent=47 // pred_check_branch
          %1035 = sbr.rel (%p1033) target = $region56
        $region55: #{tpu_custom_call.1} parent=47 // pred_region
          %s1036 = smul.u32 8, %s24
          %p1037 = scmp.lt.s32.totalorder %s1036, 15
          %s1038 = scalar_select %p1037, %s1036, 15
          %s1039 = smul.addr %s1038, 8
          %s1040 = scalar_lea.vmem %s4, %s1039
        $region56: #{tpu_custom_call.1} parent=47 // pred_fallthru
          _
        // Predicated region
        $region57: #{tpu_custom_call.1} parent=47 // pred_check
          %p1041 = pneg %p167
        $region58: #{tpu_custom_call.1} parent=47 // pred_check_branch
          %1043 = sbr.rel (%p1041) target = $region60
        $region59: #{tpu_custom_call.1} parent=47 // pred_region
          %s1044 = sand.u32 %s152, 1
          %s1045 = scalar_lea.sflag [#allocation5], %s1044
          %s1046 = sand.u32 %s152, 1
          %s1047 = scalar_lea.vmem [#allocation4], %s1046
          %1048 = dma.done %s1045, 16
        $region60: #{tpu_custom_call.1} parent=47 // pred_fallthru
          _
      $region48: #{tpu_custom_call.1} parent=5 // pred_fallthru
        _
    $region6: #{tpu_custom_call.1} parent=1 // loop_footer
      %s22 = sadd.s32 1, %s18
    $region7: #{tpu_custom_call.1} parent=1 // loop_footer_branch
      %17 = sbr.rel target = $region3
    $region8: #{tpu_custom_call.1} parent=1 // loop_exit
      _
    %1049 = vsyncpa [#allocation3], 1
    %s1050 = scalar_lea.sflag [#allocation3], 1
    %1051 = vsyncpa %s1050, 1
    %1052 = vsyncpa [#allocation5], 1
    %s1053 = scalar_lea.sflag [#allocation5], 1
    %1054 = vsyncpa %s1053, 1

</llo_original>
